<compile_context>
chip_gen: v6e
topology: v6e:2x2x1
jax: 0.10.0
libtpu: 0.0.40
codegen_flags: <defaults>
</compile_context>

<pallas_src>
import functools

import jax
import jax.numpy as jnp
from jax.experimental import pallas as pl
from jax.experimental.pallas import tpu as pltpu

D_IN, D_H, D_OUT = 13, 8, 1

_MAX_TILE_B = 32768                 # ~35 MiB VMEM at this tile (x double-buffered, lane-padded)
_VMEM_LIMIT_CAP = 48 * 1024 * 1024  # < v7x's 64 MiB physical; trivial vs 128 MiB on v5e/v6e


def _round_up(n, m):
    return -(-n // m) * m


def _fl_model_kernel(x_ref, w1_ref, b1_ref, w2_ref, b2_ref, o_ref):
    # x_ref: (TILE_B, 13) natural layout (batch rows on sublanes, features on lanes).
    x_blk = x_ref[...]
    # fc1: contract the shared 13-dim of w1 (8,13) and x_blk (TILE_B,13) -> (8, TILE_B).
    # The RHS "transpose" is handled inside the kernel (MXU operand feed / on-chip
    # relayout), so no extra HBM transpose pass is needed in the wrapper.
    h = jax.lax.dot_general(
        w1_ref[...],
        x_blk,
        dimension_numbers=(((1,), (1,)), ((), ())),
        preferred_element_type=jnp.float32,
    )
    h = jnp.maximum(h + b1_ref[...], 0.0)                       # (8, TILE_B), ReLU
    # fc2: (1,8) @ (8,TILE_B) -> (1, TILE_B); output N-dim stays lane-dense.
    z = jnp.dot(w2_ref[...], h, preferred_element_type=jnp.float32) + b2_ref[...]
    # Exact sigmoid (review: approx reciprocal not worth the error in an HBM-bound kernel).
    o_ref[...] = 1.0 / (1.0 + jnp.exp(-z))


def _auto_tile_b(batch):
    """Batch tile: multiple of 128, large enough to amortize the per-step cost,
    >= 2 grid steps for moderate/large batches (v7x megacore), VMEM-capped."""
    b128 = _round_up(batch, 128)
    if b128 <= 4096:
        return b128                      # tiny problem: one grid step is fine
    return min(_MAX_TILE_B, _round_up((batch + 1) // 2, 128))


@functools.partial(jax.jit, static_argnames=("tile_b",))
def fl_model_forward(x, w1, b1, w2, b2, *, tile_b=None):
    """Forward pass of FLModel.

    x: (B, 13). Weights/biases in PyTorch layout: w1 (8,13), b1 (8,), w2 (1,8), b2 (1,).
    Returns (B, 1) float32.
    """
    B = x.shape[0]
    assert x.shape[1] == D_IN
    if tile_b is None:
        tile_b = _auto_tile_b(B)
    assert tile_b % 128 == 0, "tile_b must be a multiple of 128 (lane width)"

    x = x.astype(jnp.float32)
    w1 = w1.astype(jnp.float32)
    w2 = w2.astype(jnp.float32)
    b1c = b1.reshape(D_H, 1).astype(jnp.float32)
    b2c = b2.reshape(D_OUT, 1).astype(jnp.float32)

    num_tiles = pl.cdiv(B, tile_b)

    # VMEM budget: x block (tile_b,13) lane-pads 13 -> 128 (512 B/row/buffer, x2 buffers);
    # out block (1,tile_b) sublane-pads 1 -> 8 (32 B/row/buffer, x2). Weights are tiny.
    vmem_needed = 2 * tile_b * 512 + 2 * tile_b * 8 * 4 + (1 << 20)
    vmem_limit = min(max(vmem_needed + (4 << 20), 16 << 20), _VMEM_LIMIT_CAP)

    out = pl.pallas_call(
        _fl_model_kernel,
        out_shape=jax.ShapeDtypeStruct((D_OUT, B), jnp.float32),
        grid=(num_tiles,),
        in_specs=[
            pl.BlockSpec((tile_b, D_IN), lambda i: (i, 0)),   # x: contiguous HBM slab, double-buffered
            pl.BlockSpec((D_H, D_IN), lambda i: (0, 0)),      # w1: resident
            pl.BlockSpec((D_H, 1), lambda i: (0, 0)),         # b1: resident
            pl.BlockSpec((D_OUT, D_H), lambda i: (0, 0)),     # w2: resident
            pl.BlockSpec((D_OUT, 1), lambda i: (0, 0)),       # b2: resident
        ],
        out_specs=pl.BlockSpec((D_OUT, tile_b), lambda i: (0, i)),  # lane-dense output slab
        compiler_params=pltpu.CompilerParams(
            dimension_semantics=("parallel",),   # independent batch tiles (megacore on v7x)
            vmem_limit_bytes=vmem_limit,
        ),
        cost_estimate=pl.CostEstimate(
            flops=2 * B * (D_IN * D_H + D_H * D_OUT) + 4 * B,
            transcendentals=B,
            bytes_accessed=4 * (B * (D_IN + D_OUT) + D_H * D_IN + D_H + D_H * D_OUT + D_OUT),
        ),
    )(x, w1, b1c, w2, b2c)

    # (1, B) lane-dense kernel output -> PyTorch (B, 1); free row-major reshape.
    return out.reshape(B, D_OUT)


def _ref_forward(x, w1, b1, w2, b2):
    h = jnp.maximum(x @ w1.T + b1, 0.0)
    return jax.nn.sigmoid(h @ w2.T + b2)


if __name__ == "__main__":
    key = jax.random.PRNGKey(0)
    k_x, k_w1, k_b1, k_w2, k_b2 = jax.random.split(key, 5)

    # Batch deliberately NOT a multiple of 128 to exercise the ragged (OOB-masked) tile.
    B = 200
    x = jax.random.normal(k_x, (B, D_IN), dtype=jnp.float32)

    lim1 = 1.0 / (D_IN ** 0.5)
    w1 = jax.random.uniform(k_w1, (D_H, D_IN), minval=-lim1, maxval=lim1, dtype=jnp.float32)
    b1 = jax.random.uniform(k_b1, (D_H,), minval=-lim1, maxval=lim1, dtype=jnp.float32)
    lim2 = 1.0 / (D_H ** 0.5)
    w2 = jax.random.uniform(k_w2, (D_OUT, D_H), minval=-lim2, maxval=lim2, dtype=jnp.float32)
    b2 = jax.random.uniform(k_b2, (D_OUT,), minval=-lim2, maxval=lim2, dtype=jnp.float32)

    ref = _ref_forward(x, w1, b1, w2, b2)

    # Auto tile (single ragged block) and an explicit small tile (2-step grid with a
    # partial final block) both go through the same kernel.
    out_auto = jax.block_until_ready(fl_model_forward(x, w1, b1, w2, b2))
    out_tiled = jax.block_until_ready(fl_model_forward(x, w1, b1, w2, b2, tile_b=128))

    assert out_auto.shape == (B, D_OUT)
    assert out_tiled.shape == (B, D_OUT)
    assert jnp.allclose(out_auto, ref, atol=2e-3, rtol=2e-3), "mismatch (auto tile) vs reference"
    assert jnp.allclose(out_tiled, ref, atol=2e-3, rtol=2e-3), "mismatch (tile_b=128) vs reference"

    print("KERNEL_OK")
</pallas_src>

<mosaic_0001>
module attributes {stable_mosaic.version = 11 : i64} {
  func.func @_fl_model_kernel(%arg0: i32, %arg1: memref<256x13xf32, #tpu.memory_space<vmem>>, %arg2: memref<8x13xf32, #tpu.memory_space<vmem>>, %arg3: memref<8x1xf32, #tpu.memory_space<vmem>>, %arg4: memref<1x8xf32, #tpu.memory_space<vmem>>, %arg5: memref<1x1xf32, #tpu.memory_space<vmem>>, %arg6: memref<1x256xf32, #tpu.memory_space<vmem>>) attributes {dimension_semantics = [#tpu.dimension_semantics<parallel>], iteration_bounds = array<i64: 1>, scalar_prefetch = 0 : i64, scratch_operands = 0 : i64, tpu.core_type = #tpu.core_type<tc>, window_params = [{transform_indices = @transform_0, window_bounds = array<i64: 256, 13>}, {pipeline_mode = #tpu.pipeline_mode<synchronous>, transform_indices = @transform_1, window_bounds = array<i64: 8, 13>}, {pipeline_mode = #tpu.pipeline_mode<synchronous>, transform_indices = @transform_2, window_bounds = array<i64: 8, 1>}, {pipeline_mode = #tpu.pipeline_mode<synchronous>, transform_indices = @transform_3, window_bounds = array<i64: 1, 8>}, {pipeline_mode = #tpu.pipeline_mode<synchronous>, transform_indices = @transform_4, window_bounds = array<i64: 1, 1>}, {transform_indices = @transform_5, window_bounds = array<i64: 1, 256>}]} {
    %c0 = arith.constant 0 : index
    %c0_0 = arith.constant 0 : index
    %0 = vector.load %arg1[%c0, %c0_0] : memref<256x13xf32, #tpu.memory_space<vmem>>, vector<256x13xf32>
    %c0_1 = arith.constant 0 : index
    %c0_2 = arith.constant 0 : index
    %1 = vector.load %arg2[%c0_1, %c0_2] : memref<8x13xf32, #tpu.memory_space<vmem>>, vector<8x13xf32>
    %cst = arith.constant dense<0.000000e+00> : vector<8x256xf32>
    %2 = tpu.matmul %1, %0, %cst {dimension_numbers = #tpu.dot_dimension_numbers<[1], [1], [0], [0], [0, 0, 1, 0], [], []>} : vector<8x13xf32>, vector<256x13xf32>, vector<8x256xf32> -> vector<8x256xf32>
    %c0_3 = arith.constant 0 : index
    %c0_4 = arith.constant 0 : index
    %3 = vector.load %arg3[%c0_3, %c0_4] : memref<8x1xf32, #tpu.memory_space<vmem>>, vector<8x1xf32>
    %4 = vector.broadcast %3 : vector<8x1xf32> to vector<8x256xf32>
    %5 = arith.addf %2, %4 : vector<8x256xf32>
    %cst_5 = arith.constant 0.000000e+00 : f32
    %6 = vector.broadcast %cst_5 : f32 to vector<8x256xf32>
    %7 = arith.maximumf %5, %6 : vector<8x256xf32>
    %c0_6 = arith.constant 0 : index
    %c0_7 = arith.constant 0 : index
    %8 = vector.load %arg4[%c0_6, %c0_7] : memref<1x8xf32, #tpu.memory_space<vmem>>, vector<1x8xf32>
    %cst_8 = arith.constant dense<0.000000e+00> : vector<1x256xf32>
    %9 = tpu.matmul %8, %7, %cst_8 {dimension_numbers = #tpu.dot_dimension_numbers<[1], [0], [0], [1], [0, 0, 1, 1], [], []>} : vector<1x8xf32>, vector<8x256xf32>, vector<1x256xf32> -> vector<1x256xf32>
    %c0_9 = arith.constant 0 : index
    %c0_10 = arith.constant 0 : index
    %10 = vector.load %arg5[%c0_9, %c0_10] : memref<1x1xf32, #tpu.memory_space<vmem>>, vector<1x1xf32>
    %11 = vector.broadcast %10 : vector<1x1xf32> to vector<1x256xf32>
    %12 = arith.addf %9, %11 : vector<1x256xf32>
    %cst_11 = arith.constant 0.000000e+00 : f32
    %13 = vector.broadcast %cst_11 : f32 to vector<1x256xf32>
    %14 = arith.subf %13, %12 : vector<1x256xf32>
    %15 = math.exp %14 : vector<1x256xf32>
    %cst_12 = arith.constant 1.000000e+00 : f32
    %16 = vector.broadcast %cst_12 : f32 to vector<1x256xf32>
    %17 = arith.addf %16, %15 : vector<1x256xf32>
    %cst_13 = arith.constant 1.000000e+00 : f32
    %18 = vector.broadcast %cst_13 : f32 to vector<1x256xf32>
    %19 = arith.divf %18, %17 : vector<1x256xf32>
    %c0_14 = arith.constant 0 : index
    %c0_15 = arith.constant 0 : index
    %20 = vector.load %arg6[%c0_14, %c0_15] : memref<1x256xf32, #tpu.memory_space<vmem>>, vector<1x256xf32>
    tpu.vector_store %arg6[%c0_14, %c0_15], %19 {strides = array<i32>} : memref<1x256xf32, #tpu.memory_space<vmem>>, vector<1x256xf32>,
    return
  }
  func.func @transform_0(%arg0: i32) -> (i32, i32) {
    %c0_i32 = arith.constant 0 : i32
    %c0_i32_0 = arith.constant 0 : i32
    return %arg0, %c0_i32 : i32, i32
  }
  func.func @transform_1(%arg0: i32) -> (i32, i32) {
    %c0_i32 = arith.constant 0 : i32
    %c0_i32_0 = arith.constant 0 : i32
    %c0_i32_1 = arith.constant 0 : i32
    return %c0_i32, %c0_i32_0 : i32, i32
  }
  func.func @transform_2(%arg0: i32) -> (i32, i32) {
    %c0_i32 = arith.constant 0 : i32
    %c0_i32_0 = arith.constant 0 : i32
    %c0_i32_1 = arith.constant 0 : i32
    return %c0_i32, %c0_i32_0 : i32, i32
  }
  func.func @transform_3(%arg0: i32) -> (i32, i32) {
    %c0_i32 = arith.constant 0 : i32
    %c0_i32_0 = arith.constant 0 : i32
    %c0_i32_1 = arith.constant 0 : i32
    return %c0_i32, %c0_i32_0 : i32, i32
  }
  func.func @transform_4(%arg0: i32) -> (i32, i32) {
    %c0_i32 = arith.constant 0 : i32
    %c0_i32_0 = arith.constant 0 : i32
    %c0_i32_1 = arith.constant 0 : i32
    return %c0_i32, %c0_i32_0 : i32, i32
  }
  func.func @transform_5(%arg0: i32) -> (i32, i32) {
    %c0_i32 = arith.constant 0 : i32
    %c0_i32_0 = arith.constant 0 : i32
    return %c0_i32, %arg0 : i32, i32
  }
}

</mosaic_0001>

<llo_original>
// kernel: fl_model_forward.1
$region0: #{fl_model_forward.1}
  #allocation0 [shape = 'u32[]', space=smem, size = 0x4, offset = 0x4, fixed_abs, tag = 'smem constant byte address 0x4 - core index']
  #allocation1 [shape = 'u32[144,128]{1,0:T(1,128)}', space=vmem, size = 0x12000, scoped, tag = 'internal scratch']
  #allocation2 [shape = 'f32[1,1]{1,0:T(1,128)S(1)}', space=vmem, size = 0x200, scoped, tag = 'scoped memory for fl_model_forward.1']
  %s0 = inlined_call_operand.vmem [shape: f32[200,13], index: 0, kind: input, shape index: {}]
  %s1 = inlined_call_operand.vmem [shape: f32[8,13], index: 1, kind: input, shape index: {}]
  %s2 = inlined_call_operand.vmem [shape: f32[8,1], index: 2, kind: input, shape index: {}]
  %s3 = inlined_call_operand.vmem [shape: f32[1,8], index: 3, kind: input, shape index: {}]
  %s4 = inlined_call_operand.<no memory space> [shape: f32[1,1], index: 4, kind: input, shape index: {}]
  %s5 = inlined_call_operand.hbm [shape: f32[1,200], index: 5, kind: output, shape index: {}]
  %s6 = sld [smem:[#allocation0]]
  $region30: #{fl_model_forward.1} parent=0
    _
  %s8 = ssub.s32 1, %s6
  %s9 = scalar_select 0, %s8, %s6
  %v10 = vstv %s4
  %11 = vst [vmem:[#allocation2] sm:$0x1] %v10
  $region1: #{fl_model_forward.1} parent=0
    #allocation3 [shape = 'u8[1024]{0}', space=vmem, size = 0x400, scoped, tag = 'output window, operand 0, single buffered']
    #allocation4 [shape = 's32[1]{0}', space=sflag, size = 0x4, scoped, tag = 'scoped memory for fl_model_forward.1']
    %12 = vsyncpa [#allocation4], 0
    // Predicated region
    $region2: #{fl_model_forward.1} parent=1 // pred_check
      _
    $region3: #{fl_model_forward.1} parent=1 // pred_check_branch
      %14 = sbr.rel (0) target = $region5
    $region4: #{fl_model_forward.1} parent=1 // pred_region
      _
    $region5: #{fl_model_forward.1} parent=1 // pred_fallthru
      _
    // Predicated region
    $region6: #{fl_model_forward.1} parent=1 // pred_check
      _
    $region7: #{fl_model_forward.1} parent=1 // pred_check_branch
      %16 = sbr.rel (0) target = $region9
    $region8: #{fl_model_forward.1} parent=1 // pred_region
      _
    $region9: #{fl_model_forward.1} parent=1 // pred_fallthru
      _
    // Predicated region
    $region10: #{fl_model_forward.1} parent=1 // pred_check
      _
    $region11: #{fl_model_forward.1} parent=1 // pred_check_branch
      %18 = sbr.rel (0) target = $region13
    $region12: #{fl_model_forward.1} parent=1 // pred_region
      _
    $region13: #{fl_model_forward.1} parent=1 // pred_fallthru
      _
    // Predicated region
    $region14: #{fl_model_forward.1} parent=1 // pred_check
      _
    $region15: #{fl_model_forward.1} parent=1 // pred_check_branch
      %20 = sbr.rel (0) target = $region17
    $region16: #{fl_model_forward.1} parent=1 // pred_region
      _
    $region17: #{fl_model_forward.1} parent=1 // pred_fallthru
      _
    // Predicated region
    $region18: #{fl_model_forward.1} parent=1 // pred_check
      _
    $region19: #{fl_model_forward.1} parent=1 // pred_check_branch
      %22 = sbr.rel (0) target = $region21
    $region20: #{fl_model_forward.1} parent=1 // pred_region
      _
    $region21: #{fl_model_forward.1} parent=1 // pred_fallthru
      _
    %v23 = vld [vmem:[%s0] sm:$0xff]
    %v24 = vld [vmem:[%s0 + $0x8] sm:$0xff]
    %v25 = vld [vmem:[%s0 + $0x10] sm:$0xff]
    %v26 = vld [vmem:[%s0 + $0x18] sm:$0xff]
    %v27 = vld [vmem:[%s0 + $0x20] sm:$0xff]
    %v28 = vld [vmem:[%s0 + $0x28] sm:$0xff]
    %v29 = vld [vmem:[%s0 + $0x30] sm:$0xff]
    %v30 = vld [vmem:[%s0 + $0x38] sm:$0xff]
    %v31 = vld [vmem:[%s0 + $0x40] sm:$0xff]
    %v32 = vld [vmem:[%s0 + $0x48] sm:$0xff]
    %v33 = vld [vmem:[%s0 + $0x50] sm:$0xff]
    %v34 = vld [vmem:[%s0 + $0x58] sm:$0xff]
    %v35 = vld [vmem:[%s0 + $0x60] sm:$0xff]
    %v36 = vld [vmem:[%s0 + $0x68] sm:$0xff]
    %v37 = vld [vmem:[%s0 + $0x70] sm:$0xff]
    %v38 = vld [vmem:[%s0 + $0x78] sm:$0xff]
    %v39 = vld [vmem:[%s0 + $0x80] sm:$0xff]
    %v40 = vld [vmem:[%s0 + $0x88] sm:$0xff]
    %v41 = vld [vmem:[%s0 + $0x90] sm:$0xff]
    %v42 = vld [vmem:[%s0 + $0x98] sm:$0xff]
    %v43 = vld [vmem:[%s0 + $0xa0] sm:$0xff]
    %v44 = vld [vmem:[%s0 + $0xa8] sm:$0xff]
    %v45 = vld [vmem:[%s0 + $0xb0] sm:$0xff]
    %v46 = vld [vmem:[%s0 + $0xb8] sm:$0xff]
    %v47 = vld [vmem:[%s0 + $0xc0] sm:$0xff]
    %v48 = vld [vmem:[%s0 + $0xc8] sm:$0xff]
    %v49 = vld [vmem:[%s0 + $0xd0] sm:$0xff]
    %v50 = vld [vmem:[%s0 + $0xd8] sm:$0xff]
    %v51 = vld [vmem:[%s0 + $0xe0] sm:$0xff]
    %v52 = vld [vmem:[%s0 + $0xe8] sm:$0xff]
    %v53 = vld [vmem:[%s0 + $0xf0] sm:$0xff]
    %v54 = vld [vmem:[%s0 + $0xf8] sm:$0xff]
    %v55 = vld [vmem:[%s1] sm:$0xff]
    %v56 = vld [vmem:[%s2] sm:$0xff]
    %58 = vset.pattern.permute.xlu0 0
    %59 = vperm.xlu0 %58, %v56
    %v60 = vpop.permute.xlu0 %59
    %vm62 = vcmask 105472
    %v64 = vsel %vm62, %v55, 0
    %v67 = vsel %vm62, %v23, 0
    %v70 = vsel %vm62, %v24, 0
    %v73 = vsel %vm62, %v25, 0
    %v76 = vsel %vm62, %v26, 0
    %v79 = vsel %vm62, %v27, 0
    %v82 = vsel %vm62, %v28, 0
    %v85 = vsel %vm62, %v29, 0
    %v88 = vsel %vm62, %v30, 0
    %v91 = vsel %vm62, %v31, 0
    %v94 = vsel %vm62, %v32, 0
    %v97 = vsel %vm62, %v33, 0
    %v100 = vsel %vm62, %v34, 0
    %v103 = vsel %vm62, %v35, 0
    %v106 = vsel %vm62, %v36, 0
    %v109 = vsel %vm62, %v37, 0
    %v112 = vsel %vm62, %v38, 0
    %v115 = vsel %vm62, %v39, 0
    %v118 = vsel %vm62, %v40, 0
    %v121 = vsel %vm62, %v41, 0
    %v124 = vsel %vm62, %v42, 0
    %v127 = vsel %vm62, %v43, 0
    %v130 = vsel %vm62, %v44, 0
    %v133 = vsel %vm62, %v45, 0
    %v136 = vsel %vm62, %v46, 0
    %v139 = vsel %vm62, %v47, 0
    %v142 = vsel %vm62, %v48, 0
    %v145 = vsel %vm62, %v49, 0
    %v148 = vsel %vm62, %v50, 0
    %v151 = vsel %vm62, %v51, 0
    %v154 = vsel %vm62, %v52, 0
    %v157 = vsel %vm62, %v53, 0
    %v160 = vsel %vm62, %v54, 0
    %162 = vmatprep.subr.mxu0 0.0
    %163 = vmatpush1.xpose.msra.mxu0 %v112
    %164 = vmatprep.subr.mxu0 0.0
    %165 = vmatpush1.xpose.msra.mxu0 %v109
    %166 = vmatprep.subr.mxu0 0.0
    %167 = vmatpush1.xpose.msra.mxu0 %v106
    %168 = vmatprep.subr.mxu0 0.0
    %169 = vmatpush1.xpose.msra.mxu0 %v103
    %170 = vmatprep.subr.mxu0 0.0
    %171 = vmatpush1.xpose.msra.mxu0 %v100
    %172 = vmatprep.subr.mxu0 0.0
    %173 = vmatpush1.xpose.msra.mxu0 %v97
    %174 = vmatprep.subr.mxu0 0.0
    %175 = vmatpush1.xpose.msra.mxu0 %v94
    %176 = vmatprep.subr.mxu0 0.0
    %177 = vmatpush1.xpose.msra.mxu0 %v91
    %178 = vmatprep.subr.mxu0 0.0
    %179 = vmatpush1.xpose.msra.mxu0 %v88
    %180 = vmatprep.subr.mxu0 0.0
    %181 = vmatpush1.xpose.msra.mxu0 %v85
    %182 = vmatprep.subr.mxu0 0.0
    %183 = vmatpush1.xpose.msra.mxu0 %v82
    %184 = vmatprep.subr.mxu0 0.0
    %185 = vmatpush1.xpose.msra.mxu0 %v79
    %186 = vmatprep.subr.mxu0 0.0
    %187 = vmatpush1.xpose.msra.mxu0 %v76
    %188 = vmatprep.subr.mxu0 0.0
    %189 = vmatpush1.xpose.msra.mxu0 %v73
    %190 = vmatprep.subr.mxu0 0.0
    %191 = vmatpush1.xpose.msra.mxu0 %v70
    %192 = vmatprep.subr.mxu0 0.0
    %193 = vmatpush1.xpose.msra.mxu0 %v67
    %194 = vmatprep.subr.mxu0 0.0
    %195 = vmatpush2.xpose.msra.mxu0 %v160
    %196 = vmatprep.subr.mxu0 0.0
    %197 = vmatpush2.xpose.msra.mxu0 %v157
    %198 = vmatprep.subr.mxu0 0.0
    %199 = vmatpush2.xpose.msra.mxu0 %v154
    %200 = vmatprep.subr.mxu0 0.0
    %201 = vmatpush2.xpose.msra.mxu0 %v151
    %202 = vmatprep.subr.mxu0 0.0
    %203 = vmatpush2.xpose.msra.mxu0 %v148
    %204 = vmatprep.subr.mxu0 0.0
    %205 = vmatpush2.xpose.msra.mxu0 %v145
    %206 = vmatprep.subr.mxu0 0.0
    %207 = vmatpush2.xpose.msra.mxu0 %v142
    %208 = vmatprep.subr.mxu0 0.0
    %209 = vmatpush2.xpose.msra.mxu0 %v139
    %210 = vmatprep.subr.mxu0 0.0
    %211 = vmatpush2.xpose.msra.mxu0 %v136
    %212 = vmatprep.subr.mxu0 0.0
    %213 = vmatpush2.xpose.msra.mxu0 %v133
    %214 = vmatprep.subr.mxu0 0.0
    %215 = vmatpush2.xpose.msra.mxu0 %v130
    %216 = vmatprep.subr.mxu0 0.0
    %217 = vmatpush2.xpose.msra.mxu0 %v127
    %218 = vmatprep.subr.mxu0 0.0
    %219 = vmatpush2.xpose.msra.mxu0 %v124
    %220 = vmatprep.subr.mxu0 0.0
    %221 = vmatpush2.xpose.msra.mxu0 %v121
    %222 = vmatprep.subr.mxu0 0.0
    %223 = vmatpush2.xpose.msra.mxu0 %v118
    %224 = vmatprep.subr.mxu0 0.0
    %225 = vmatpush2.xpose.msra.mxu0 %v115
    %226 = vmatprep.mubr.f32.mxu0 0.0
    %227 = vmatmul.mubr.f32.gmra.mxu0 %v64
    %v228 = vpop.f32.mrf.mxu0
    %v229 = vadd.f32 %v60, %v228
    %v230 = vpop.f32.mrf.mxu0
    %v231 = vadd.f32 %v60, %v230
    %232 = vdwg.mxu0
    %v233 = vmax.f32 %v229, 0.0
    %v234 = vmax.f32 %v231, 0.0
    %v235 = vld [vmem:[%s3] sm:$0x1]
    %v236 = vld [vmem:[#allocation2] sm:$0x1]
    %238 = vset.pattern.permute.xlu0 0
    %239 = vperm.xlu0 %238, %v236
    %v240 = vpop.permute.xlu0 %239
    %v242 = vlaneseq
    %v243 = vshrl.u32 %v242, 7
    %v244 = vsub.s32 0, %v243
    %v245 = vrot.slane %v240, %v244
    %vm246 = vcmask 64512
    %v248 = vsel %vm246, %v235, 0
    %250 = vmatprep.subr.mxu0 0.0
    %251 = vmatpush1.msra.mxu0 0.0
    %252 = vmatprep.subr.mxu0 0.0
    %253 = vmatpush1.msra.mxu0 0.0
    %254 = vmatprep.subr.mxu0 0.0
    %255 = vmatpush1.msra.mxu0 0.0
    %256 = vmatprep.subr.mxu0 0.0
    %257 = vmatpush1.msra.mxu0 0.0
    %258 = vmatprep.subr.mxu0 0.0
    %259 = vmatpush1.msra.mxu0 0.0
    %260 = vmatprep.subr.mxu0 0.0
    %261 = vmatpush1.msra.mxu0 0.0
    %262 = vmatprep.subr.mxu0 0.0
    %263 = vmatpush1.msra.mxu0 0.0
    %264 = vmatprep.subr.mxu0 0.0
    %265 = vmatpush1.msra.mxu0 0.0
    %266 = vmatprep.subr.mxu0 0.0
    %267 = vmatpush1.msra.mxu0 0.0
    %268 = vmatprep.subr.mxu0 0.0
    %269 = vmatpush1.msra.mxu0 0.0
    %270 = vmatprep.subr.mxu0 0.0
    %271 = vmatpush1.msra.mxu0 0.0
    %272 = vmatprep.subr.mxu0 0.0
    %273 = vmatpush1.msra.mxu0 0.0
    %274 = vmatprep.subr.mxu0 0.0
    %275 = vmatpush1.msra.mxu0 0.0
    %276 = vmatprep.subr.mxu0 0.0
    %277 = vmatpush1.msra.mxu0 0.0
    %278 = vmatprep.subr.mxu0 0.0
    %279 = vmatpush1.msra.mxu0 0.0
    %280 = vmatprep.subr.mxu0 %v234
    %281 = vmatpush1.msra.mxu0 %v233
    %282 = vmatprep.subr.mxu0 0.0
    %283 = vmatpush2.msra.mxu0 0.0
    %284 = vmatprep.subr.mxu0 0.0
    %285 = vmatpush2.msra.mxu0 0.0
    %286 = vmatprep.subr.mxu0 0.0
    %287 = vmatpush2.msra.mxu0 0.0
    %288 = vmatprep.subr.mxu0 0.0
    %289 = vmatpush2.msra.mxu0 0.0
    %290 = vmatprep.subr.mxu0 0.0
    %291 = vmatpush2.msra.mxu0 0.0
    %292 = vmatprep.subr.mxu0 0.0
    %293 = vmatpush2.msra.mxu0 0.0
    %294 = vmatprep.subr.mxu0 0.0
    %295 = vmatpush2.msra.mxu0 0.0
    %296 = vmatprep.subr.mxu0 0.0
    %297 = vmatpush2.msra.mxu0 0.0
    %298 = vmatprep.subr.mxu0 0.0
    %299 = vmatpush2.msra.mxu0 0.0
    %300 = vmatprep.subr.mxu0 0.0
    %301 = vmatpush2.msra.mxu0 0.0
    %302 = vmatprep.subr.mxu0 0.0
    %303 = vmatpush2.msra.mxu0 0.0
    %304 = vmatprep.subr.mxu0 0.0
    %305 = vmatpush2.msra.mxu0 0.0
    %306 = vmatprep.subr.mxu0 0.0
    %307 = vmatpush2.msra.mxu0 0.0
    %308 = vmatprep.subr.mxu0 0.0
    %309 = vmatpush2.msra.mxu0 0.0
    %310 = vmatprep.subr.mxu0 0.0
    %311 = vmatpush2.msra.mxu0 0.0
    %312 = vmatprep.subr.mxu0 0.0
    %313 = vmatpush2.msra.mxu0 0.0
    %314 = vmatprep.mubr.f32.mxu0 0.0
    %315 = vmatmul.mubr.f32.gmra.mxu0 %v248
    %v316 = vpop.f32.mrf.mxu0
    %v317 = vadd.f32 %v245, %v316
    %v318 = vpop.f32.mrf.mxu0
    %v319 = vadd.f32 %v245, %v318
    %320 = vdwg.mxu0
    %v321 = vsub.f32 0.0, %v317
    %v322 = vsub.f32 0.0, %v319
    %v323 = vmul.f32 %v321, 1.442695
    %v324 = vpow.pop %v323
    %v325 = vmul.f32 %v322, 1.442695
    %v326 = vpow.pop %v325
    %v327 = vadd.f32 %v324, 1.0
    %v328 = vadd.f32 %v326, 1.0
    %v329 = vrcp.pop %v327
    %v330 = vmul.f32 1.0, %v329
    %v331 = vrcp.pop %v328
    %v332 = vmul.f32 1.0, %v331
    %v335 = vcombine.low %v330, %v332
    %v337 = vunpack.c.l.s4 1966171168
    %v338 = vunpack.c.0.s8 %v337
    %v339 = vlaneseq
    %v340 = vshrl.u32 %v339, 7
    %v341 = vsub.s32 %v338, %v340
    %v342 = vrot.slane %v335, %v341
    %v344 = vunpack.c.l.s4 1966171168
    %v345 = vunpack.c.0.s8 %v344
    %v346 = vlaneseq
    %v347 = vshrl.u32 %v346, 7
    %v348 = vsub.s32 %v345, %v347
    %v349 = vrot.slane %v342, %v348
    %v351 = vlaneseq
    %vm352 = vcmp.ge.s32.totalorder %v351, 0
    %vm353 = vcmp.lt.s32.totalorder %v351, 256
    %vm354 = vmand %vm352, %vm353
    %355 = vst.msk [vmem:[#allocation3] sm:$0x3] %vm354, %v349
    // Predicated region
    $region22: #{fl_model_forward.1} parent=1 // pred_check
      _
    $region23: #{fl_model_forward.1} parent=1 // pred_check_branch
      %357 = sbr.rel (0) target = $region25
    $region24: #{fl_model_forward.1} parent=1 // pred_region
      %s359 = ssub.s32 32, 32
      %360 = vsyncadd [#allocation4], %s359
      %s362 = sshll.u32 [#allocation3], 4
      %s363 = int_to_ptr.vmem [resolvable:$true] %s362
      %365 = dma.vmem_to_hbm [thread:$0]  %s363, 32, %s5, [#allocation4]
    $region25: #{fl_model_forward.1} parent=1 // pred_fallthru
      _
    // Predicated region
    $region26: #{fl_model_forward.1} parent=1 // pred_check
      _
    $region27: #{fl_model_forward.1} parent=1 // pred_check_branch
      %367 = sbr.rel (0) target = $region29
    $region28: #{fl_model_forward.1} parent=1 // pred_region
      %368 = dma.done [#allocation4], 32
    $region29: #{fl_model_forward.1} parent=1 // pred_fallthru
      _
    %369 = vsyncpa [#allocation4], 1

</llo_original>
